<compile_context>
chip_gen: v6e
topology: v6e:2x2x1
jax: 0.10.0
libtpu: 0.0.40
codegen_flags: <defaults>
</compile_context>

<pallas_src>
import math
import numpy as np
import jax
import jax.numpy as jnp
from jax.experimental import pallas as pl
from jax.experimental.pallas import tpu as pltpu

LANE = 128
SUB = 8
PAD_GRAN = LANE * SUB  # 1024: anchor axis padded to this so (S, 128) tiles are sublane-dense


# --------------------------------------------------------------------------- kernels

def _distance_kernel(ctr_ref, anc_ref, out_ref):
    # ctr_ref: (N, 3)  spacing-scaled GT centers (grid units * spacing)
    # anc_ref: (3, TA) spacing-scaled anchor coordinates (z, y, x rows)
    # out_ref: (N, TA) = -sum_k (ctr_k - anchor_k)^2 ; heavy math runs at (N, TA) occupancy.
    # TODO(synk): the (N, 3) center tile uses 3/128 lanes; negligible (96 B/step) but could move to SMEM.
    ctr = ctr_ref[...]
    anc = anc_ref[...]
    d0 = ctr[:, 0:1] - anc[0:1, :]
    d1 = ctr[:, 1:2] - anc[1:2, :]
    d2 = ctr[:, 2:3] - anc[2:3, :]
    out_ref[...] = -(d0 * d0 + d1 * d1 + d2 * d2)


def make_loss_kernel(strides):
    """Fused per-anchor focal / L1 / DIoU kernel on sublane-dense (s_tile, 128) tiles.

    Inputs per grid step (b, a):
      pcls (s,128) | psh (3,s,128) | pof (3,s,128) | tscore (s,128) |
      tgt12 (12,s,128): rows 0:3 GT center (grid units), 3:6 GT half-extents,
                        6:9 GT center (abs), 9:12 GT full extents |
      ignore (s,128) | anc (3,s,128) grid-unit anchor coords (shared over b).
    Outputs:
      closs (s,128): full-resolution focal cls loss (needed by hard-negative mining)
      part  (8,128): per-lane partials: row0 sum|psh-tsh|, row1 sum|pof-toff|, row2 sum DIoU.
    """
    sd = (float(strides[0]), float(strides[1]), float(strides[2]))
    alpha = 0.75
    eps = 1e-7

    def kernel(pcls_ref, psh_ref, pof_ref, tscr_ref, tgt_ref, ign_ref, anc_ref,
               closs_ref, part_ref):
        pred = pcls_ref[...]
        tgt = tscr_ref[...]
        ign = ign_ref[...]

        # --- focal classification loss: shared e = exp(-|pred|), approx reciprocal on EUP ---
        e = jnp.exp(-jnp.abs(pred))
        one_p_e = 1.0 + e
        # TODO(synk): switch back to exact 1.0/one_p_e if training-loss tolerance requires it.
        inv_ope = pl.reciprocal(one_p_e, approx=True)
        prob = jnp.where(pred >= 0.0, inv_ope, e * inv_ope)
        prob = jnp.clip(prob, 1e-4, 1.0 - 1e-4)
        is_pos = tgt == 1.0
        af = jnp.where(is_pos, alpha, 1.0 - alpha)
        fw = jnp.where(is_pos, 1.0 - prob, prob)
        fw = af * fw * fw                                   # gamma = 2
        bce = jnp.maximum(pred, 0.0) - pred * tgt + jnp.log(one_p_e)
        closs = fw * bce
        closs = jnp.where(ign == 0.0, closs, 0.0)
        fn = jnp.logical_and(prob < 0.8, is_pos)
        closs_ref[...] = jnp.where(fn, 4.0 * closs, closs)  # false-negative re-weighting

        psh = psh_ref[...]
        pof = pof_ref[...]
        tg = tgt_ref[...]
        anc = anc_ref[...]

        l1s_p = jnp.zeros((1, LANE), jnp.float32)
        l1o_p = jnp.zeros((1, LANE), jnp.float32)
        inter = vol1 = vol2 = c2 = rho2 = None
        for k in (2, 1, 0):
            a_k = anc[k]
            psh_k = psh[k]
            pof_k = pof[k]
            # fg-masked L1 terms, reduced over sublanes to per-lane partials on the fly
            ls = jnp.where(is_pos, jnp.abs(psh_k - tg[3 + k]), 0.0)
            lo = jnp.where(is_pos, jnp.abs(pof_k - (tg[k] - a_k)), 0.0)
            l1s_p = l1s_p + jnp.sum(ls, axis=0, keepdims=True)
            l1o_p = l1o_p + jnp.sum(lo, axis=0, keepdims=True)
            # bbox decode + per-axis DIoU accumulation (few simultaneous temporaries)
            pc = (a_k + pof_k) * sd[k]                      # decoded center (abs coords)
            p1 = pc - psh_k
            p2 = pc + psh_k
            tc = tg[6 + k]
            th = tg[9 + k] * 0.5
            t1 = tc - th
            t2 = tc + th
            ov = jnp.maximum(jnp.minimum(p2, t2) - jnp.maximum(p1, t1), 0.0)
            ck = jnp.maximum(p2, t2) - jnp.minimum(p1, t1)
            dk = t1 + t2 - p1 - p2
            e1 = p2 - p1
            e2 = t2 - t1
            if inter is None:
                inter, vol1, vol2, c2, rho2 = ov, e1, e2, ck * ck, dk * dk
            else:
                inter = inter * ov
                vol1 = vol1 * e1
                vol2 = vol2 * e2
                c2 = c2 + ck * ck
                rho2 = rho2 + dk * dk

        inter = inter + eps
        union = vol1 + vol2 - inter
        c2 = c2 + eps
        # mask BEFORE the divides: unmatched / padded anchors carry garbage boxes.
        inv_union = pl.reciprocal(jnp.where(is_pos, union, 1.0), approx=True)
        inv_c2 = pl.reciprocal(jnp.where(is_pos, c2, 1.0), approx=True)
        diou = inter * inv_union - (rho2 * 0.25) * inv_c2
        diou = jnp.where(is_pos, diou, 0.0)

        part_ref[0:1, :] = l1s_p
        part_ref[1:2, :] = l1o_p
        part_ref[2:3, :] = jnp.sum(diou, axis=0, keepdims=True)
        part_ref[3:8, :] = jnp.zeros((SUB - 3, LANE), jnp.float32)

    return kernel


# --------------------------------------------------------------------------- pallas wrappers

def _pick_s_tile(S, B, cap_rows=256):
    """Largest multiple-of-8 divisor of S under the row cap (256 rows = 32768 anchors/step).

    When B == 1 the tile is halved so the ('parallel','parallel') grid keeps >= 2 steps
    for v7x's two TensorCores.  S is a multiple of 8 by construction, so 8 always divides.
    """
    limit = min(cap_rows, S)
    if B == 1 and S >= 2 * SUB:
        limit = min(limit, S // 2)
    t = (limit // SUB) * SUB
    while t > SUB:
        if S % t == 0:
            return t
        t -= SUB
    return SUB


def distance_pallas(ctr_sp, anc_sp, ta):
    B, N, _ = ctr_sp.shape
    A = anc_sp.shape[-1]
    return pl.pallas_call(
        _distance_kernel,
        out_shape=jax.ShapeDtypeStruct((B, N, A), jnp.float32),
        grid=(B, A // ta),
        in_specs=[
            pl.BlockSpec((None, N, 3), lambda b, a: (b, 0, 0)),
            pl.BlockSpec((None, 3, ta), lambda b, a: (0, 0, a)),
        ],
        out_specs=pl.BlockSpec((None, N, ta), lambda b, a: (b, 0, a)),
        compiler_params=pltpu.CompilerParams(
            dimension_semantics=("parallel", "parallel")),
    )(ctr_sp, anc_sp)


def loss_terms_pallas(pcls, psh, pof, tscr, tgt12, ign, anc, strides, s_tile):
    B, S, _ = pcls.shape
    n_a = S // s_tile
    kernel = make_loss_kernel(strides)
    row_spec = pl.BlockSpec((None, s_tile, LANE), lambda b, a: (b, a, 0))
    ch3_spec = pl.BlockSpec((None, 3, s_tile, LANE), lambda b, a: (b, 0, a, 0))
    return pl.pallas_call(
        kernel,
        out_shape=(jax.ShapeDtypeStruct((B, S, LANE), jnp.float32),
                   jax.ShapeDtypeStruct((B, n_a, SUB, LANE), jnp.float32)),
        grid=(B, n_a),
        in_specs=[
            row_spec,                                                          # pred cls
            ch3_spec,                                                          # pred shape
            ch3_spec,                                                          # pred offset
            row_spec,                                                          # target score
            pl.BlockSpec((None, 12, s_tile, LANE), lambda b, a: (b, 0, a, 0)),  # gathered GT rows
            row_spec,                                                          # ignore mask
            pl.BlockSpec((None, 3, s_tile, LANE), lambda b, a: (0, 0, a, 0)),   # anchors (shared over b)
        ],
        out_specs=[
            row_spec,                                                          # cls loss
            pl.BlockSpec((None, None, SUB, LANE), lambda b, a: (b, a, 0, 0)),   # per-block partials
        ],
        compiler_params=pltpu.CompilerParams(
            dimension_semantics=("parallel", "parallel"),
            vmem_limit_bytes=32 * 1024 * 1024),  # explicit: v5e's scoped default is 16 MiB
    )(pcls, psh, pof, tscr, tgt12, ign, anc)


# --------------------------------------------------------------------------- glue (host / JAX)

def make_anchors_np(feat_dhw, input_size, grid_cell_offset=0.0):
    d, h, w = feat_dhw
    strides = np.array([input_size[0] / d, input_size[1] / h, input_size[2] / w], np.float32)
    sz = np.arange(d, dtype=np.float32) + grid_cell_offset
    sy = np.arange(h, dtype=np.float32) + grid_cell_offset
    sx = np.arange(w, dtype=np.float32) + grid_cell_offset
    zz, yy, xx = np.meshgrid(sz, sy, sx, indexing="ij")
    anchor_points = np.stack([zz, yy, xx], -1).reshape(-1, 3).astype(np.float32)
    return anchor_points, strides


def target_preprocess_np(annotations, input_size, mask_ignore):
    # host-side (tiny, data-dependent python control flow — exact mirror of the torch code)
    B = annotations.shape[0]
    ann_new = -np.ones_like(annotations)
    for j in range(B):
        bbox_ann = annotations[j]
        boxes = bbox_ann[bbox_ann[:, -1] > -1]
        targets = []
        crop_box = np.array([0.0, 0.0, 0.0, input_size[0], input_size[1], input_size[2]], np.float32)
        for s in range(len(boxes)):
            lab = boxes[s]
            z1 = max(lab[0] - lab[3] / 2.0, crop_box[0])
            y1 = max(lab[1] - lab[4] / 2.0, crop_box[1])
            x1 = max(lab[2] - lab[5] / 2.0, crop_box[2])
            z2 = min(lab[0] + lab[3] / 2.0, crop_box[3])
            y2 = min(lab[1] + lab[4] / 2.0, crop_box[4])
            x2 = min(lab[2] + lab[5] / 2.0, crop_box[5])
            nd = max(z2 - z1, 0.0)
            nh = max(y2 - y1, 0.0)
            nw = max(x2 - x1, 0.0)
            if nd * nh * nw == 0:
                continue
            percent = nw * nh * nd / (lab[3] * lab[4] * lab[5])
            if percent > 0.1 and nw * nh * nd >= 15:
                targets.append(np.array([z1 + 0.5 * nd, y1 + 0.5 * nh, x1 + 0.5 * nw,
                                         nd, nh, nw, 0.0], np.float32))
            else:
                mask_ignore[j, 0, int(z1):int(math.ceil(z2)),
                            int(y1):int(math.ceil(y2)),
                            int(x1):int(math.ceil(x2))] = -1
        if targets:
            t = np.stack(targets, 0)
            ann_new[j, :len(t)] = t
    return ann_new, mask_ignore


def detection_loss_forward(Cls, Shape, Offset, annotations_np,
                           crop_size, spacing, topk=7, ignore_ratio=5,
                           num_hard=100, ratio=100, s_tile=None):
    B = Cls.shape[0]
    d, h, w = Cls.shape[2:]
    A = d * h * w
    N = annotations_np.shape[1]
    A_pad = ((A + PAD_GRAN - 1) // PAD_GRAN) * PAD_GRAN
    S = A_pad // LANE
    if s_tile is None:
        s_tile = _pick_s_tile(S, B)
    ta = s_tile * LANE
    k_all = (ignore_ratio + 1) * topk
    assert A >= k_all, "need at least k_all real anchors so padded anchors never enter top-k"

    # ---- host annotation preprocessing + crop ignore volume ----
    mask_ignore_vol = np.zeros((B, 1, d, h, w), np.float32)
    proc_ann_np, mask_ignore_vol = target_preprocess_np(
        np.asarray(annotations_np, np.float32), crop_size, mask_ignore_vol)
    anchor_points, strides = make_anchors_np((d, h, w), crop_size)
    spacing_np = np.asarray(spacing, np.float32)

    # pad anchors with a huge coordinate so padded slots never win the top-k
    pad = A_pad - A
    anchor_pad = np.pad(anchor_points, ((0, pad), (0, 0)), constant_values=1.0e6)
    anc_grid = jnp.asarray(anchor_pad.T[None])                                  # (1,3,A_pad) grid units
    anc_sp = jnp.asarray(anchor_pad.T[None] * spacing_np[None, :, None])        # spacing-scaled
    strides_vec = jnp.asarray(strides)
    spacing_vec = jnp.asarray(spacing_np)
    ann = jnp.asarray(proc_ann_np)                                              # (B,N,7)
    tmi = jnp.pad(jnp.asarray(mask_ignore_vol.reshape(B, A)), ((0, 0), (0, pad)))

    # predictions -> lane/sublane-dense (B,[C],S,128) slabs (reshape/pad only, no concat)
    # TODO(synk): bf16 input storage (upcast in-kernel) is a further HBM win on v5e if tolerance allows.
    ps = jnp.pad(jnp.asarray(Cls).reshape(B, A), ((0, 0), (0, pad))).reshape(B, S, LANE)
    psh = jnp.pad(jnp.asarray(Shape).reshape(B, 3, A),
                  ((0, 0), (0, 0), (0, pad))).reshape(B, 3, S, LANE)
    pof = jnp.pad(jnp.asarray(Offset).reshape(B, 3, A),
                  ((0, 0), (0, 0), (0, pad))).reshape(B, 3, S, LANE)

    # ---------------- get_pos_target ----------------
    ctr_sp = ann[:, :, :3] / strides_vec[None, None, :] * spacing_vec[None, None, :]  # (B,N,3)
    dist = distance_pallas(ctr_sp, anc_sp, ta=ta)                                     # (B,N,A_pad)

    # TODO(synk): top_k / sort-based hard-negative mining remain XLA ops.
    _, topi = jax.lax.top_k(dist, k_all)                                              # (B,N,k_all)
    top_pos = topi[:, :, :topk]
    top_ign = topi[:, :, topk:]

    # scatter-based target assignment (replaces dense (B,N,A) one-hot / argmax / max / min glue)
    bi = jnp.arange(B, dtype=jnp.int32)[:, None, None]
    valid_gt = ann[:, :, -1] > -1                                                     # (B,N)
    vgt_f = valid_gt.astype(jnp.float32)[:, :, None]
    tscore = jnp.zeros((B, A_pad), jnp.float32).at[bi, top_pos].max(
        jnp.broadcast_to(vgt_f, top_pos.shape))
    n_ids = jnp.arange(N, dtype=jnp.int32)[None, :, None]
    n_vals = jnp.where(valid_gt[:, :, None], n_ids, N)
    gt_min = jnp.full((B, A_pad), N, jnp.int32).at[bi, top_pos].min(
        jnp.broadcast_to(n_vals, top_pos.shape))
    gt_idx = jnp.where(gt_min >= N, 0, gt_min)          # == argmax-of-one-hot (0 fallback)
    ign_hit = jnp.zeros((B, A_pad), jnp.float32).at[bi, top_ign].max(
        jnp.broadcast_to(vgt_f, top_ign.shape))

    anch_valid = jnp.arange(A_pad) < A
    ignore = jnp.logical_or(ign_hit > 0.0, tmi != 0.0)
    ignore = jnp.logical_or(ignore, jnp.logical_not(anch_valid)[None, :]).astype(jnp.float32)

    # per-GT target matrix (B,12,N): tiny transpose only, gathered along the last axis
    ann_t = jnp.transpose(ann, (0, 2, 1))                                             # (B,7,N)
    gt_src = jnp.concatenate([
        ann_t[:, 0:3, :] / strides_vec[None, :, None],    # 0:3  GT center, grid units
        ann_t[:, 3:6, :] * 0.5,                           # 3:6  GT half extents
        ann_t[:, 0:6, :],                                 # 6:12 GT abs center + full extents
    ], axis=1)
    gt_bcast = jnp.broadcast_to(gt_idx[:, None, :], (B, 12, A_pad))
    tgt12 = jnp.take_along_axis(gt_src, gt_bcast, axis=2)                              # (B,12,A_pad)

    # sublane-dense reshapes (contiguous splits: no data movement)
    tscr_s = tscore.reshape(B, S, LANE)
    ign_s = ignore.reshape(B, S, LANE)
    tgt12_s = tgt12.reshape(B, 12, S, LANE)
    anc_s = anc_grid.reshape(1, 3, S, LANE)

    closs, part = loss_terms_pallas(ps, psh, pof, tscr_s, tgt12_s, ign_s, anc_s,
                                    strides, s_tile)
    clsa = closs.reshape(B, A_pad)

    # ---------------- cls loss reduction (hard-negative mining) ----------------
    pos_mask = tscore == 1.0
    num_pos = pos_mask.sum(axis=1)
    pos_sum = jnp.sum(jnp.where(pos_mask, clsa, 0.0), axis=1)
    neg_mask = jnp.logical_and(anch_valid[None, :], tscore == 0.0)
    negvals = jnp.where(neg_mask, clsa, -1.0)
    neg_sorted = jnp.flip(jnp.sort(negvals, axis=1), axis=1)        # descending
    # TODO(synk): torch randomly subsamples up to 10000 negatives with host RNG; identity when
    #             the negative count is <= 10000 (true at these shapes).
    k_per_b = jnp.where(num_pos > 0, ratio * num_pos, num_hard)
    idx = jnp.arange(A_pad)[None, :]
    sel = (idx < k_per_b[:, None]) & (neg_sorted >= 0.0)
    neg_sum = jnp.sum(jnp.where(sel, neg_sorted, 0.0), axis=1)
    cls_loss_b = (pos_sum + neg_sum) / jnp.maximum(num_pos.astype(jnp.float32), 1.0)
    cls_loss = jnp.mean(cls_loss_b)

    # -------- fg-masked regression / offset / iou losses (from in-kernel partial sums) --------
    nfg = num_pos.sum().astype(jnp.float32)
    reg_sum = jnp.sum(part[:, :, 0, :])
    off_sum = jnp.sum(part[:, :, 1, :])
    diou_sum = jnp.sum(part[:, :, 2, :])
    reg_loss = jnp.where(nfg > 0, reg_sum / (3.0 * nfg), 0.0)
    off_loss = jnp.where(nfg > 0, off_sum / (3.0 * nfg), 0.0)
    iou_loss = jnp.where(nfg > 0, -(diou_sum / nfg), 0.0)
    return cls_loss, reg_loss, off_loss, iou_loss


# --------------------------------------------------------------------------- main

if __name__ == "__main__":
    B = 2
    d, h, w = 8, 16, 16           # feature-map (Cls/Shape/Offset spatial dims), A = 2048
    N = 8                         # max annotations per sample
    crop_size = [16, 64, 64]      # input (crop) size -> strides (2, 4, 4)
    spacing = [2.0, 1.0, 1.0]
    topk = 7

    key = jax.random.PRNGKey(0)
    k1, k2, k3 = jax.random.split(key, 3)
    Cls = jax.random.normal(k1, (B, 1, d, h, w), jnp.float32)
    Shape = jnp.abs(jax.random.normal(k2, (B, 3, d, h, w), jnp.float32)) + 0.5
    Offset = jax.random.normal(k3, (B, 3, d, h, w), jnp.float32) * 0.5

    # annotations: [cz, cy, cx, dz, dy, dx, label], label=-1 -> padding
    ann_np = -np.ones((B, N, 7), np.float32)
    ann_np[0, 0] = [8.0, 20.0, 20.0, 6.0, 10.0, 10.0, 0.0]   # kept
    ann_np[0, 1] = [4.0, 40.0, 50.0, 4.0, 8.0, 8.0, 0.0]     # kept
    ann_np[1, 0] = [10.0, 30.0, 30.0, 5.0, 12.0, 12.0, 0.0]  # kept
    ann_np[1, 1] = [1.0, 3.0, 3.0, 1.0, 2.0, 2.0, 0.0]       # too small -> ignore-region path

    losses = detection_loss_forward(Cls, Shape, Offset, ann_np, crop_size, spacing, topk=topk)
    jax.block_until_ready(losses)
    print("KERNEL_OK")
</pallas_src>

<mosaic_0001>
module attributes {stable_mosaic.version = 11 : i64} {
  func.func @_distance_kernel(%arg0: i32, %arg1: i32, %arg2: memref<1x8x3xf32, #tpu.memory_space<vmem>>, %arg3: memref<1x3x2048xf32, #tpu.memory_space<vmem>>, %arg4: memref<1x8x2048xf32, #tpu.memory_space<vmem>>) attributes {dimension_semantics = [#tpu.dimension_semantics<parallel>, #tpu.dimension_semantics<parallel>], iteration_bounds = array<i64: 2, 1>, scalar_prefetch = 0 : i64, scratch_operands = 0 : i64, tpu.core_type = #tpu.core_type<tc>, window_params = [{transform_indices = @transform_0, window_bounds = array<i64: 1, 8, 3>}, {transform_indices = @transform_1, window_bounds = array<i64: 1, 3, 2048>}, {transform_indices = @transform_2, window_bounds = array<i64: 1, 8, 2048>}]} {
    %c0 = arith.constant 0 : index
    %c0_0 = arith.constant 0 : index
    %c0_1 = arith.constant 0 : index
    %0 = vector.load %arg2[%c0, %c0_0, %c0_1] : memref<1x8x3xf32, #tpu.memory_space<vmem>>, vector<1x8x3xf32>
    %1 = vector.shape_cast %0 : vector<1x8x3xf32> to vector<8x3xf32>
    %c0_2 = arith.constant 0 : index
    %c0_3 = arith.constant 0 : index
    %c0_4 = arith.constant 0 : index
    %2 = vector.load %arg3[%c0_2, %c0_3, %c0_4] : memref<1x3x2048xf32, #tpu.memory_space<vmem>>, vector<1x3x2048xf32>
    %3 = vector.shape_cast %2 : vector<1x3x2048xf32> to vector<3x2048xf32>
    %4 = vector.extract_strided_slice %1 {offsets = [0, 0], sizes = [8, 1], strides = [1, 1]} : vector<8x3xf32> to vector<8x1xf32>
    %5 = vector.extract_strided_slice %3 {offsets = [0, 0], sizes = [1, 2048], strides = [1, 1]} : vector<3x2048xf32> to vector<1x2048xf32>
    %6 = vector.broadcast %4 : vector<8x1xf32> to vector<8x2048xf32>
    %7 = vector.broadcast %5 : vector<1x2048xf32> to vector<8x2048xf32>
    %8 = arith.subf %6, %7 : vector<8x2048xf32>
    %9 = vector.extract_strided_slice %1 {offsets = [0, 1], sizes = [8, 1], strides = [1, 1]} : vector<8x3xf32> to vector<8x1xf32>
    %10 = vector.extract_strided_slice %3 {offsets = [1, 0], sizes = [1, 2048], strides = [1, 1]} : vector<3x2048xf32> to vector<1x2048xf32>
    %11 = vector.broadcast %9 : vector<8x1xf32> to vector<8x2048xf32>
    %12 = vector.broadcast %10 : vector<1x2048xf32> to vector<8x2048xf32>
    %13 = arith.subf %11, %12 : vector<8x2048xf32>
    %14 = vector.extract_strided_slice %1 {offsets = [0, 2], sizes = [8, 1], strides = [1, 1]} : vector<8x3xf32> to vector<8x1xf32>
    %15 = vector.extract_strided_slice %3 {offsets = [2, 0], sizes = [1, 2048], strides = [1, 1]} : vector<3x2048xf32> to vector<1x2048xf32>
    %16 = vector.broadcast %14 : vector<8x1xf32> to vector<8x2048xf32>
    %17 = vector.broadcast %15 : vector<1x2048xf32> to vector<8x2048xf32>
    %18 = arith.subf %16, %17 : vector<8x2048xf32>
    %19 = arith.mulf %8, %8 : vector<8x2048xf32>
    %20 = arith.mulf %13, %13 : vector<8x2048xf32>
    %21 = arith.addf %19, %20 : vector<8x2048xf32>
    %22 = arith.mulf %18, %18 : vector<8x2048xf32>
    %23 = arith.addf %21, %22 : vector<8x2048xf32>
    %cst = arith.constant 0.000000e+00 : f32
    %24 = vector.broadcast %cst : f32 to vector<8x2048xf32>
    %25 = arith.subf %24, %23 : vector<8x2048xf32>
    %c0_5 = arith.constant 0 : index
    %c0_6 = arith.constant 0 : index
    %c0_7 = arith.constant 0 : index
    %26 = vector.load %arg4[%c0_5, %c0_6, %c0_7] : memref<1x8x2048xf32, #tpu.memory_space<vmem>>, vector<1x8x2048xf32>
    %27 = vector.shape_cast %26 : vector<1x8x2048xf32> to vector<8x2048xf32>
    %28 = vector.shape_cast %25 : vector<8x2048xf32> to vector<1x8x2048xf32>
    tpu.vector_store %arg4[%c0_5, %c0_6, %c0_7], %28 {strides = array<i32>} : memref<1x8x2048xf32, #tpu.memory_space<vmem>>, vector<1x8x2048xf32>,
    return
  }
  func.func @transform_0(%arg0: i32, %arg1: i32) -> (i32, i32, i32) {
    %c0_i32 = arith.constant 0 : i32
    %c0_i32_0 = arith.constant 0 : i32
    %c0_i32_1 = arith.constant 0 : i32
    return %arg0, %c0_i32, %c0_i32_0 : i32, i32, i32
  }
  func.func @transform_1(%arg0: i32, %arg1: i32) -> (i32, i32, i32) {
    %c0_i32 = arith.constant 0 : i32
    %c0_i32_0 = arith.constant 0 : i32
    %c0_i32_1 = arith.constant 0 : i32
    return %c0_i32, %c0_i32_0, %arg1 : i32, i32, i32
  }
  func.func @transform_2(%arg0: i32, %arg1: i32) -> (i32, i32, i32) {
    %c0_i32 = arith.constant 0 : i32
    %c0_i32_0 = arith.constant 0 : i32
    return %arg0, %c0_i32, %arg1 : i32, i32, i32
  }
}

</mosaic_0001>

<llo_original>
// kernel: tpu_custom_call.1
$region0: #{tpu_custom_call.1}
  #allocation0 [shape = 'u32[]', space=smem, size = 0x4, offset = 0x4, fixed_abs, tag = 'smem constant byte address 0x4 - core index']
  #allocation1 [shape = 'u32[144,128]{1,0:T(1,128)}', space=vmem, size = 0x12000, scoped, tag = 'internal scratch']
  %s0 = inlined_call_operand.vmem [shape: f32[2,8,3], index: 0, kind: input, shape index: {}]
  %s1 = inlined_call_operand.vmem [shape: f32[1,3,2048], index: 1, kind: input, shape index: {}]
  %s2 = inlined_call_operand.hbm [shape: f32[2,8,2048], index: 2, kind: output, shape index: {}]
  %s3 = sld [smem:[#allocation0]]
  $region41: #{tpu_custom_call.1} parent=0
    _
  %s5 = ssub.s32 1, %s3
  %s6 = scalar_select 0, %s5, %s3
  $region1: #{tpu_custom_call.1} parent=0
    #allocation2 [shape = 'u8[131072]{0}', space=vmem, size = 0x20000, scoped, tag = 'output window, operand 0']
    #allocation3 [shape = 's32[2]{0}', space=sflag, size = 0x8, scoped, tag = 'scoped memory for tpu_custom_call.1']
    %7 = vsyncpa [#allocation3], 0
    %s8 = scalar_lea.sflag [#allocation3], 1
    %9 = vsyncpa %s8, 0
    loop: start=0, step=1, limit=4
    $region2: #{tpu_custom_call.1} parent=1 // loop_pre_header
      _
    $region3: #{tpu_custom_call.1} parent=1 // loop_header
      %s11 = sphi 0, %s15
      %p12 = scmp.ge.s32.totalorder %s11, 4
      %s18 = sphi 0, %s30
      %s19 = sphi 0, %s26
      %s20 = sphi 0, %s18
      %s21 = sphi 0, %s19
      %s22 = sphi 0, %s20
      %s23 = sphi 0, %s21
      %s33 = sphi 0, %s35
      %s36 = sphi 0, %s33
      %s37 = sphi 0, %s36
      %s53 = sphi 0, %s37
      %s59 = sphi 0, %s61
      %s62 = sphi 0, %s59
      %s63 = sphi 0, %s62
      %s79 = sphi 0, %s63
      %s87 = sphi 0, %s89
      %s90 = sphi 0, %s87
      %s91 = sphi 0, %s90
      %s107 = sphi 0, %s91
    $region4: #{tpu_custom_call.1} parent=1 // loop_header_branch
      %14 = sbr.rel (%p12) target = $region8
    $region5: #{tpu_custom_call.1} parent=1 // loop_body
      %s16 = ssub.s32 %s11, 1
      %s17 = ssub.s32 %s11, 2
      %s24 = sadd.s32 1, %s19
      %p25 = scmp.ge.s32.totalorder %s24, 1
      %s26 = scalar_select %p25, 0, %s24
      %s27 = sadd.s32 1, %s18
      %s28 = scalar_select %p25, %s27, %s18
      %p29 = scmp.ge.s32.totalorder %s28, 2
      %s30 = scalar_select %p29, 0, %s28
      %s31 = ssub.s32 %s18, %s30
      %p32 = scmp.eq.s32.totalorder %s31, 0
      %s34 = sadd.s32 %s33, 1
      %s35 = scalar_select %p32, %s33, %s34
      %p38 = pneg %p32
      %p39 = scmp.eq.s32.totalorder %s11, 1
      %p40 = por %p38, %p39
      %p41 = scmp.ne.s32.totalorder %s33, %s36
      %p42 = scmp.eq.s32.totalorder %s11, 0
      %p43 = por %p41, %p42
      %p44 = scmp.ne.s32.totalorder %s33, %s36
      %p45 = scmp.eq.s32.totalorder %s16, 1
      %p46 = por %p44, %p45
      %p47 = scmp.ne.s32.totalorder %s36, %s37
      %p48 = scmp.eq.s32.totalorder %s16, 0
      %p49 = por %p47, %p48
      %p50 = scmp.ne.s32.totalorder %s36, %s37
      %p51 = scmp.eq.s32.totalorder %s17, 1
      %p52 = por %p50, %p51
      %p54 = scmp.ne.s32.totalorder %s37, %s53
      %p55 = scmp.eq.s32.totalorder %s17, 0
      %p56 = por %p54, %p55
      %s57 = ssub.s32 %s19, %s26
      %p58 = scmp.eq.s32.totalorder %s57, 0
      %s60 = sadd.s32 %s59, 1
      %s61 = scalar_select %p58, %s59, %s60
      %p64 = pneg %p58
      %p65 = scmp.eq.s32.totalorder %s11, 1
      %p66 = por %p64, %p65
      %p67 = scmp.ne.s32.totalorder %s59, %s62
      %p68 = scmp.eq.s32.totalorder %s11, 0
      %p69 = por %p67, %p68
      %p70 = scmp.ne.s32.totalorder %s59, %s62
      %p71 = scmp.eq.s32.totalorder %s16, 1
      %p72 = por %p70, %p71
      %p73 = scmp.ne.s32.totalorder %s62, %s63
      %p74 = scmp.eq.s32.totalorder %s16, 0
      %p75 = por %p73, %p74
      %p76 = scmp.ne.s32.totalorder %s62, %s63
      %p77 = scmp.eq.s32.totalorder %s17, 1
      %p78 = por %p76, %p77
      %p80 = scmp.ne.s32.totalorder %s63, %s79
      %p81 = scmp.eq.s32.totalorder %s17, 0
      %p82 = por %p80, %p81
      %s83 = ssub.s32 %s18, %s30
      %s84 = ssub.s32 %s19, %s26
      %s85 = sor.u32 %s83, %s84
      %p86 = scmp.eq.s32.totalorder %s85, 0
      %s88 = sadd.s32 %s87, 1
      %s89 = scalar_select %p86, %s87, %s88
      %p92 = pneg %p86
      %p93 = scmp.eq.s32.totalorder %s11, 1
      %p94 = por %p92, %p93
      %p95 = scmp.ne.s32.totalorder %s87, %s90
      %p96 = scmp.eq.s32.totalorder %s11, 0
      %p97 = por %p95, %p96
      %p98 = scmp.ne.s32.totalorder %s87, %s90
      %p99 = scmp.eq.s32.totalorder %s16, 1
      %p100 = por %p98, %p99
      %p101 = scmp.ne.s32.totalorder %s90, %s91
      %p102 = scmp.eq.s32.totalorder %s16, 0
      %p103 = por %p101, %p102
      %p104 = scmp.ne.s32.totalorder %s90, %s91
      %p105 = scmp.eq.s32.totalorder %s17, 1
      %p106 = por %p104, %p105
      %p108 = scmp.ne.s32.totalorder %s91, %s107
      %p109 = scmp.eq.s32.totalorder %s17, 0
      %p110 = por %p108, %p109
      %p111 = scmp.le.s32.totalorder 1, %s11
      %p112 = scmp.lt.s32.totalorder %s11, 3
      %p113 = pnand %p111, %p112
      %p114 = pneg %p113
      // Predicated region
      $region9: #{tpu_custom_call.1} parent=5 // pred_check
        _
      $region10: #{tpu_custom_call.1} parent=5 // pred_check_branch
        %116 = sbr.rel (%p113) target = $region12
      $region11: #{tpu_custom_call.1} parent=5 // pred_region
        %s117 = ssub.s32 %s11, 1
        // Predicated region
        $region13: #{tpu_custom_call.1} parent=11 // pred_check
          %p118 = pneg %p75
        $region14: #{tpu_custom_call.1} parent=11 // pred_check_branch
          %120 = sbr.rel (%p118) target = $region16
        $region15: #{tpu_custom_call.1} parent=11 // pred_region
          %s121 = smul.u32 16, %s21
          %p122 = scmp.lt.s32.totalorder %s121, 15
          %s123 = scalar_select %p122, %s121, 15
          %s124 = smul.addr %s123, 4
          %s125 = scalar_lea.vmem %s1, %s124
          %s126 = smul.u32 16, %s21
        $region16: #{tpu_custom_call.1} parent=11 // pred_fallthru
          _
      $region12: #{tpu_custom_call.1} parent=5 // pred_fallthru
        _
      %p127 = scmp.lt.s32.totalorder %s11, 2
      // Predicated region
      $region17: #{tpu_custom_call.1} parent=5 // pred_check
        %p128 = pneg %p127
      $region18: #{tpu_custom_call.1} parent=5 // pred_check_branch
        %130 = sbr.rel (%p128) target = $region20
      $region19: #{tpu_custom_call.1} parent=5 // pred_region
        // Predicated region
        $region21: #{tpu_custom_call.1} parent=19 // pred_check
          %p131 = pneg %p43
        $region22: #{tpu_custom_call.1} parent=19 // pred_check_branch
          %133 = sbr.rel (%p131) target = $region24
        $region23: #{tpu_custom_call.1} parent=19 // pred_region
          %p134 = scmp.lt.s32.totalorder %s18, 1
          %s135 = scalar_select %p134, %s18, 1
          %s136 = smul.addr %s135, 8
          %s137 = scalar_lea.vmem %s0, %s136
        $region24: #{tpu_custom_call.1} parent=19 // pred_fallthru
          _
      $region20: #{tpu_custom_call.1} parent=5 // pred_fallthru
        _
      %p138 = scmp.le.s32.totalorder 1, %s11
      %p139 = scmp.lt.s32.totalorder %s11, 3
      %p140 = pnand %p138, %p139
      %p141 = pneg %p140
      // Predicated region
      $region25: #{tpu_custom_call.1} parent=5 // pred_check
        _
      $region26: #{tpu_custom_call.1} parent=5 // pred_check_branch
        %143 = sbr.rel (%p140) target = $region28
      $region27: #{tpu_custom_call.1} parent=5 // pred_region
        %s144 = ssub.s32 %s11, 1
        %p145 = scmp.lt.s32.totalorder %s20, 1
        %s146 = scalar_select %p145, %s20, 1
        %s147 = smul.addr %s146, 8
        %s148 = scalar_lea.vmem %s0, %s147
        %p149 = pneg %p49
        %p150 = pneg %p46
        %s151 = smul.u32 16, %s21
        %p152 = scmp.lt.s32.totalorder %s151, 15
        %s153 = scalar_select %p152, %s151, 15
        %s154 = smul.addr %s153, 4
        %s155 = scalar_lea.vmem %s1, %s154
        %p156 = pneg %p75
        %p157 = pneg %p72
        %p158 = pneg %p103
        %p159 = pneg %p100
        %s160 = sand.u32 %s90, 1
        %s161 = scalar_lea.sflag [#allocation3], %s160
        %s162 = sand.u32 %s90, 1
        %s163 = smul.addr %s162, 128
        %s164 = scalar_lea.vmem [#allocation2], %s163
        %p165 = scmp.lt.s32.totalorder %s20, 1
        %s166 = scalar_select %p165, %s20, 1
        %s167 = smul.addr %s166, 8
        %s168 = scalar_lea.vmem %s0, %s167
        %s169 = smul.u32 16, %s21
        %p170 = scmp.lt.s32.totalorder %s169, 15
        %s171 = scalar_select %p170, %s169, 15
        %s172 = smul.addr %s171, 4
        %s173 = scalar_lea.vmem %s1, %s172
        %s174 = smul.u32 16, %s21
        %s175 = smul.u32 16, %s21
        %v176 = vld [vmem:[%s168] sm:$0xff]
        %v177 = vld [vmem:[%s173] sm:$0x77]
        %v178 = vld [vmem:[%s173 + $0x8] sm:$0x77]
        %v179 = vld [vmem:[%s173 + $0x10] sm:$0x77]
        %v180 = vld [vmem:[%s173 + $0x18] sm:$0x77]
        %v181 = vld [vmem:[%s173 + $0x20] sm:$0x77]
        %v182 = vld [vmem:[%s173 + $0x28] sm:$0x77]
        %v183 = vld [vmem:[%s173 + $0x30] sm:$0x77]
        %v184 = vld [vmem:[%s173 + $0x38] sm:$0x77]
        %186 = vset.pattern.permute.xlu0 0
        %187 = vperm.xlu0 %186, %v176
        %v188 = vpop.permute.xlu0 %187
        %v198 = vlaneseq
        %v199 = vshrl.u32 %v198, 7
        %v200 = vsub.s32 0, %v199
        %v201 = vrot.slane %v177, %v200
        %v202 = vlaneseq
        %v203 = vshrl.u32 %v202, 7
        %v204 = vsub.s32 4, %v203
        %v205 = vrot.slane %v177, %v204
        %v206 = vlaneseq
        %v207 = vshrl.u32 %v206, 7
        %v208 = vsub.s32 0, %v207
        %v209 = vrot.slane %v178, %v208
        %v210 = vlaneseq
        %v211 = vshrl.u32 %v210, 7
        %v212 = vsub.s32 4, %v211
        %v213 = vrot.slane %v178, %v212
        %v214 = vlaneseq
        %v215 = vshrl.u32 %v214, 7
        %v216 = vsub.s32 0, %v215
        %v217 = vrot.slane %v179, %v216
        %v218 = vlaneseq
        %v219 = vshrl.u32 %v218, 7
        %v220 = vsub.s32 4, %v219
        %v221 = vrot.slane %v179, %v220
        %v222 = vlaneseq
        %v223 = vshrl.u32 %v222, 7
        %v224 = vsub.s32 0, %v223
        %v225 = vrot.slane %v180, %v224
        %v226 = vlaneseq
        %v227 = vshrl.u32 %v226, 7
        %v228 = vsub.s32 4, %v227
        %v229 = vrot.slane %v180, %v228
        %v230 = vlaneseq
        %v231 = vshrl.u32 %v230, 7
        %v232 = vsub.s32 0, %v231
        %v233 = vrot.slane %v181, %v232
        %v234 = vlaneseq
        %v235 = vshrl.u32 %v234, 7
        %v236 = vsub.s32 4, %v235
        %v237 = vrot.slane %v181, %v236
        %v238 = vlaneseq
        %v239 = vshrl.u32 %v238, 7
        %v240 = vsub.s32 0, %v239
        %v241 = vrot.slane %v182, %v240
        %v242 = vlaneseq
        %v243 = vshrl.u32 %v242, 7
        %v244 = vsub.s32 4, %v243
        %v245 = vrot.slane %v182, %v244
        %v246 = vlaneseq
        %v247 = vshrl.u32 %v246, 7
        %v248 = vsub.s32 0, %v247
        %v249 = vrot.slane %v183, %v248
        %v250 = vlaneseq
        %v251 = vshrl.u32 %v250, 7
        %v252 = vsub.s32 4, %v251
        %v253 = vrot.slane %v183, %v252
        %v254 = vlaneseq
        %v255 = vshrl.u32 %v254, 7
        %v256 = vsub.s32 0, %v255
        %v257 = vrot.slane %v184, %v256
        %v258 = vlaneseq
        %v259 = vshrl.u32 %v258, 7
        %v260 = vsub.s32 4, %v259
        %v261 = vrot.slane %v184, %v260
        %v278 = vlaneseq
        %v279 = vshrl.u32 %v278, 7
        %v280 = vsub.s32 0, %v279
        %v281 = vrot.slane %v201, %v280
        %v282 = vlaneseq
        %v283 = vshrl.u32 %v282, 7
        %v284 = vsub.s32 0, %v283
        %v285 = vrot.slane %v205, %v284
        %v286 = vlaneseq
        %v287 = vshrl.u32 %v286, 7
        %v288 = vsub.s32 0, %v287
        %v289 = vrot.slane %v209, %v288
        %v290 = vlaneseq
        %v291 = vshrl.u32 %v290, 7
        %v292 = vsub.s32 0, %v291
        %v293 = vrot.slane %v213, %v292
        %v294 = vlaneseq
        %v295 = vshrl.u32 %v294, 7
        %v296 = vsub.s32 0, %v295
        %v297 = vrot.slane %v217, %v296
        %v298 = vlaneseq
        %v299 = vshrl.u32 %v298, 7
        %v300 = vsub.s32 0, %v299
        %v301 = vrot.slane %v221, %v300
        %v302 = vlaneseq
        %v303 = vshrl.u32 %v302, 7
        %v304 = vsub.s32 0, %v303
        %v305 = vrot.slane %v225, %v304
        %v306 = vlaneseq
        %v307 = vshrl.u32 %v306, 7
        %v308 = vsub.s32 0, %v307
        %v309 = vrot.slane %v229, %v308
        %v310 = vlaneseq
        %v311 = vshrl.u32 %v310, 7
        %v312 = vsub.s32 0, %v311
        %v313 = vrot.slane %v233, %v312
        %v314 = vlaneseq
        %v315 = vshrl.u32 %v314, 7
        %v316 = vsub.s32 0, %v315
        %v317 = vrot.slane %v237, %v316
        %v318 = vlaneseq
        %v319 = vshrl.u32 %v318, 7
        %v320 = vsub.s32 0, %v319
        %v321 = vrot.slane %v241, %v320
        %v322 = vlaneseq
        %v323 = vshrl.u32 %v322, 7
        %v324 = vsub.s32 0, %v323
        %v325 = vrot.slane %v245, %v324
        %v326 = vlaneseq
        %v327 = vshrl.u32 %v326, 7
        %v328 = vsub.s32 0, %v327
        %v329 = vrot.slane %v249, %v328
        %v330 = vlaneseq
        %v331 = vshrl.u32 %v330, 7
        %v332 = vsub.s32 0, %v331
        %v333 = vrot.slane %v253, %v332
        %v334 = vlaneseq
        %v335 = vshrl.u32 %v334, 7
        %v336 = vsub.s32 0, %v335
        %v337 = vrot.slane %v257, %v336
        %v338 = vlaneseq
        %v339 = vshrl.u32 %v338, 7
        %v340 = vsub.s32 0, %v339
        %v341 = vrot.slane %v261, %v340
        %v342 = vsub.f32 %v188, %v281
        %v343 = vsub.f32 %v188, %v285
        %v344 = vsub.f32 %v188, %v289
        %v345 = vsub.f32 %v188, %v293
        %v346 = vsub.f32 %v188, %v297
        %v347 = vsub.f32 %v188, %v301
        %v348 = vsub.f32 %v188, %v305
        %v349 = vsub.f32 %v188, %v309
        %v350 = vsub.f32 %v188, %v313
        %v351 = vsub.f32 %v188, %v317
        %v352 = vsub.f32 %v188, %v321
        %v353 = vsub.f32 %v188, %v325
        %v354 = vsub.f32 %v188, %v329
        %v355 = vsub.f32 %v188, %v333
        %v356 = vsub.f32 %v188, %v337
        %v357 = vsub.f32 %v188, %v341
        %358 = vset.pattern.permute.xlu0 1
        %359 = vperm.xlu0 %358, %v176
        %v360 = vpop.permute.xlu0 %359
        %v362 = vlaneseq
        %v363 = vshrl.u32 %v362, 7
        %v364 = vsub.s32 1, %v363
        %v365 = vrot.slane %v177, %v364
        %v366 = vlaneseq
        %v367 = vshrl.u32 %v366, 7
        %v368 = vsub.s32 5, %v367
        %v369 = vrot.slane %v177, %v368
        %v370 = vlaneseq
        %v371 = vshrl.u32 %v370, 7
        %v372 = vsub.s32 1, %v371
        %v373 = vrot.slane %v178, %v372
        %v374 = vlaneseq
        %v375 = vshrl.u32 %v374, 7
        %v376 = vsub.s32 5, %v375
        %v377 = vrot.slane %v178, %v376
        %v378 = vlaneseq
        %v379 = vshrl.u32 %v378, 7
        %v380 = vsub.s32 1, %v379
        %v381 = vrot.slane %v179, %v380
        %v382 = vlaneseq
        %v383 = vshrl.u32 %v382, 7
        %v384 = vsub.s32 5, %v383
        %v385 = vrot.slane %v179, %v384
        %v386 = vlaneseq
        %v387 = vshrl.u32 %v386, 7
        %v388 = vsub.s32 1, %v387
        %v389 = vrot.slane %v180, %v388
        %v390 = vlaneseq
        %v391 = vshrl.u32 %v390, 7
        %v392 = vsub.s32 5, %v391
        %v393 = vrot.slane %v180, %v392
        %v394 = vlaneseq
        %v395 = vshrl.u32 %v394, 7
        %v396 = vsub.s32 1, %v395
        %v397 = vrot.slane %v181, %v396
        %v398 = vlaneseq
        %v399 = vshrl.u32 %v398, 7
        %v400 = vsub.s32 5, %v399
        %v401 = vrot.slane %v181, %v400
        %v402 = vlaneseq
        %v403 = vshrl.u32 %v402, 7
        %v404 = vsub.s32 1, %v403
        %v405 = vrot.slane %v182, %v404
        %v406 = vlaneseq
        %v407 = vshrl.u32 %v406, 7
        %v408 = vsub.s32 5, %v407
        %v409 = vrot.slane %v182, %v408
        %v410 = vlaneseq
        %v411 = vshrl.u32 %v410, 7
        %v412 = vsub.s32 1, %v411
        %v413 = vrot.slane %v183, %v412
        %v414 = vlaneseq
        %v415 = vshrl.u32 %v414, 7
        %v416 = vsub.s32 5, %v415
        %v417 = vrot.slane %v183, %v416
        %v418 = vlaneseq
        %v419 = vshrl.u32 %v418, 7
        %v420 = vsub.s32 1, %v419
        %v421 = vrot.slane %v184, %v420
        %v422 = vlaneseq
        %v423 = vshrl.u32 %v422, 7
        %v424 = vsub.s32 5, %v423
        %v425 = vrot.slane %v184, %v424
        %v442 = vlaneseq
        %v443 = vshrl.u32 %v442, 7
        %v444 = vsub.s32 1, %v443
        %v445 = vrot.slane %v365, %v444
        %v446 = vlaneseq
        %v447 = vshrl.u32 %v446, 7
        %v448 = vsub.s32 1, %v447
        %v449 = vrot.slane %v369, %v448
        %v450 = vlaneseq
        %v451 = vshrl.u32 %v450, 7
        %v452 = vsub.s32 1, %v451
        %v453 = vrot.slane %v373, %v452
        %v454 = vlaneseq
        %v455 = vshrl.u32 %v454, 7
        %v456 = vsub.s32 1, %v455
        %v457 = vrot.slane %v377, %v456
        %v458 = vlaneseq
        %v459 = vshrl.u32 %v458, 7
        %v460 = vsub.s32 1, %v459
        %v461 = vrot.slane %v381, %v460
        %v462 = vlaneseq
        %v463 = vshrl.u32 %v462, 7
        %v464 = vsub.s32 1, %v463
        %v465 = vrot.slane %v385, %v464
        %v466 = vlaneseq
        %v467 = vshrl.u32 %v466, 7
        %v468 = vsub.s32 1, %v467
        %v469 = vrot.slane %v389, %v468
        %v470 = vlaneseq
        %v471 = vshrl.u32 %v470, 7
        %v472 = vsub.s32 1, %v471
        %v473 = vrot.slane %v393, %v472
        %v474 = vlaneseq
        %v475 = vshrl.u32 %v474, 7
        %v476 = vsub.s32 1, %v475
        %v477 = vrot.slane %v397, %v476
        %v478 = vlaneseq
        %v479 = vshrl.u32 %v478, 7
        %v480 = vsub.s32 1, %v479
        %v481 = vrot.slane %v401, %v480
        %v482 = vlaneseq
        %v483 = vshrl.u32 %v482, 7
        %v484 = vsub.s32 1, %v483
        %v485 = vrot.slane %v405, %v484
        %v486 = vlaneseq
        %v487 = vshrl.u32 %v486, 7
        %v488 = vsub.s32 1, %v487
        %v489 = vrot.slane %v409, %v488
        %v490 = vlaneseq
        %v491 = vshrl.u32 %v490, 7
        %v492 = vsub.s32 1, %v491
        %v493 = vrot.slane %v413, %v492
        %v494 = vlaneseq
        %v495 = vshrl.u32 %v494, 7
        %v496 = vsub.s32 1, %v495
        %v497 = vrot.slane %v417, %v496
        %v498 = vlaneseq
        %v499 = vshrl.u32 %v498, 7
        %v500 = vsub.s32 1, %v499
        %v501 = vrot.slane %v421, %v500
        %v502 = vlaneseq
        %v503 = vshrl.u32 %v502, 7
        %v504 = vsub.s32 1, %v503
        %v505 = vrot.slane %v425, %v504
        %v506 = vsub.f32 %v360, %v445
        %v507 = vsub.f32 %v360, %v449
        %v508 = vsub.f32 %v360, %v453
        %v509 = vsub.f32 %v360, %v457
        %v510 = vsub.f32 %v360, %v461
        %v511 = vsub.f32 %v360, %v465
        %v512 = vsub.f32 %v360, %v469
        %v513 = vsub.f32 %v360, %v473
        %v514 = vsub.f32 %v360, %v477
        %v515 = vsub.f32 %v360, %v481
        %v516 = vsub.f32 %v360, %v485
        %v517 = vsub.f32 %v360, %v489
        %v518 = vsub.f32 %v360, %v493
        %v519 = vsub.f32 %v360, %v497
        %v520 = vsub.f32 %v360, %v501
        %v521 = vsub.f32 %v360, %v505
        %522 = vset.pattern.permute.xlu0 2
        %523 = vperm.xlu0 %522, %v176
        %v524 = vpop.permute.xlu0 %523
        %v526 = vlaneseq
        %v527 = vshrl.u32 %v526, 7
        %v528 = vsub.s32 2, %v527
        %v529 = vrot.slane %v177, %v528
        %v530 = vlaneseq
        %v531 = vshrl.u32 %v530, 7
        %v532 = vsub.s32 6, %v531
        %v533 = vrot.slane %v177, %v532
        %v534 = vlaneseq
        %v535 = vshrl.u32 %v534, 7
        %v536 = vsub.s32 2, %v535
        %v537 = vrot.slane %v178, %v536
        %v538 = vlaneseq
        %v539 = vshrl.u32 %v538, 7
        %v540 = vsub.s32 6, %v539
        %v541 = vrot.slane %v178, %v540
        %v542 = vlaneseq
        %v543 = vshrl.u32 %v542, 7
        %v544 = vsub.s32 2, %v543
        %v545 = vrot.slane %v179, %v544
        %v546 = vlaneseq
        %v547 = vshrl.u32 %v546, 7
        %v548 = vsub.s32 6, %v547
        %v549 = vrot.slane %v179, %v548
        %v550 = vlaneseq
        %v551 = vshrl.u32 %v550, 7
        %v552 = vsub.s32 2, %v551
        %v553 = vrot.slane %v180, %v552
        %v554 = vlaneseq
        %v555 = vshrl.u32 %v554, 7
        %v556 = vsub.s32 6, %v555
        %v557 = vrot.slane %v180, %v556
        %v558 = vlaneseq
        %v559 = vshrl.u32 %v558, 7
        %v560 = vsub.s32 2, %v559
        %v561 = vrot.slane %v181, %v560
        %v562 = vlaneseq
        %v563 = vshrl.u32 %v562, 7
        %v564 = vsub.s32 6, %v563
        %v565 = vrot.slane %v181, %v564
        %v566 = vlaneseq
        %v567 = vshrl.u32 %v566, 7
        %v568 = vsub.s32 2, %v567
        %v569 = vrot.slane %v182, %v568
        %v570 = vlaneseq
        %v571 = vshrl.u32 %v570, 7
        %v572 = vsub.s32 6, %v571
        %v573 = vrot.slane %v182, %v572
        %v574 = vlaneseq
        %v575 = vshrl.u32 %v574, 7
        %v576 = vsub.s32 2, %v575
        %v577 = vrot.slane %v183, %v576
        %v578 = vlaneseq
        %v579 = vshrl.u32 %v578, 7
        %v580 = vsub.s32 6, %v579
        %v581 = vrot.slane %v183, %v580
        %v582 = vlaneseq
        %v583 = vshrl.u32 %v582, 7
        %v584 = vsub.s32 2, %v583
        %v585 = vrot.slane %v184, %v584
        %v586 = vlaneseq
        %v587 = vshrl.u32 %v586, 7
        %v588 = vsub.s32 6, %v587
        %v589 = vrot.slane %v184, %v588
        %v606 = vlaneseq
        %v607 = vshrl.u32 %v606, 7
        %v608 = vsub.s32 2, %v607
        %v609 = vrot.slane %v529, %v608
        %v610 = vlaneseq
        %v611 = vshrl.u32 %v610, 7
        %v612 = vsub.s32 2, %v611
        %v613 = vrot.slane %v533, %v612
        %v614 = vlaneseq
        %v615 = vshrl.u32 %v614, 7
        %v616 = vsub.s32 2, %v615
        %v617 = vrot.slane %v537, %v616
        %v618 = vlaneseq
        %v619 = vshrl.u32 %v618, 7
        %v620 = vsub.s32 2, %v619
        %v621 = vrot.slane %v541, %v620
        %v622 = vlaneseq
        %v623 = vshrl.u32 %v622, 7
        %v624 = vsub.s32 2, %v623
        %v625 = vrot.slane %v545, %v624
        %v626 = vlaneseq
        %v627 = vshrl.u32 %v626, 7
        %v628 = vsub.s32 2, %v627
        %v629 = vrot.slane %v549, %v628
        %v630 = vlaneseq
        %v631 = vshrl.u32 %v630, 7
        %v632 = vsub.s32 2, %v631
        %v633 = vrot.slane %v553, %v632
        %v634 = vlaneseq
        %v635 = vshrl.u32 %v634, 7
        %v636 = vsub.s32 2, %v635
        %v637 = vrot.slane %v557, %v636
        %v638 = vlaneseq
        %v639 = vshrl.u32 %v638, 7
        %v640 = vsub.s32 2, %v639
        %v641 = vrot.slane %v561, %v640
        %v642 = vlaneseq
        %v643 = vshrl.u32 %v642, 7
        %v644 = vsub.s32 2, %v643
        %v645 = vrot.slane %v565, %v644
        %v646 = vlaneseq
        %v647 = vshrl.u32 %v646, 7
        %v648 = vsub.s32 2, %v647
        %v649 = vrot.slane %v569, %v648
        %v650 = vlaneseq
        %v651 = vshrl.u32 %v650, 7
        %v652 = vsub.s32 2, %v651
        %v653 = vrot.slane %v573, %v652
        %v654 = vlaneseq
        %v655 = vshrl.u32 %v654, 7
        %v656 = vsub.s32 2, %v655
        %v657 = vrot.slane %v577, %v656
        %v658 = vlaneseq
        %v659 = vshrl.u32 %v658, 7
        %v660 = vsub.s32 2, %v659
        %v661 = vrot.slane %v581, %v660
        %v662 = vlaneseq
        %v663 = vshrl.u32 %v662, 7
        %v664 = vsub.s32 2, %v663
        %v665 = vrot.slane %v585, %v664
        %v666 = vlaneseq
        %v667 = vshrl.u32 %v666, 7
        %v668 = vsub.s32 2, %v667
        %v669 = vrot.slane %v589, %v668
        %v670 = vsub.f32 %v524, %v609
        %v671 = vsub.f32 %v524, %v613
        %v672 = vsub.f32 %v524, %v617
        %v673 = vsub.f32 %v524, %v621
        %v674 = vsub.f32 %v524, %v625
        %v675 = vsub.f32 %v524, %v629
        %v676 = vsub.f32 %v524, %v633
        %v677 = vsub.f32 %v524, %v637
        %v678 = vsub.f32 %v524, %v641
        %v679 = vsub.f32 %v524, %v645
        %v680 = vsub.f32 %v524, %v649
        %v681 = vsub.f32 %v524, %v653
        %v682 = vsub.f32 %v524, %v657
        %v683 = vsub.f32 %v524, %v661
        %v684 = vsub.f32 %v524, %v665
        %v685 = vsub.f32 %v524, %v669
        %v686 = vmul.f32 %v342, %v342
        %v687 = vmul.f32 %v343, %v343
        %v688 = vmul.f32 %v344, %v344
        %v689 = vmul.f32 %v345, %v345
        %v690 = vmul.f32 %v346, %v346
        %v691 = vmul.f32 %v347, %v347
        %v692 = vmul.f32 %v348, %v348
        %v693 = vmul.f32 %v349, %v349
        %v694 = vmul.f32 %v350, %v350
        %v695 = vmul.f32 %v351, %v351
        %v696 = vmul.f32 %v352, %v352
        %v697 = vmul.f32 %v353, %v353
        %v698 = vmul.f32 %v354, %v354
        %v699 = vmul.f32 %v355, %v355
        %v700 = vmul.f32 %v356, %v356
        %v701 = vmul.f32 %v357, %v357
        %v702 = vmul.f32 %v506, %v506
        %v703 = vmul.f32 %v507, %v507
        %v704 = vmul.f32 %v508, %v508
        %v705 = vmul.f32 %v509, %v509
        %v706 = vmul.f32 %v510, %v510
        %v707 = vmul.f32 %v511, %v511
        %v708 = vmul.f32 %v512, %v512
        %v709 = vmul.f32 %v513, %v513
        %v710 = vmul.f32 %v514, %v514
        %v711 = vmul.f32 %v515, %v515
        %v712 = vmul.f32 %v516, %v516
        %v713 = vmul.f32 %v517, %v517
        %v714 = vmul.f32 %v518, %v518
        %v715 = vmul.f32 %v519, %v519
        %v716 = vmul.f32 %v520, %v520
        %v717 = vmul.f32 %v521, %v521
        %v718 = vadd.f32 %v686, %v702
        %v719 = vadd.f32 %v687, %v703
        %v720 = vadd.f32 %v688, %v704
        %v721 = vadd.f32 %v689, %v705
        %v722 = vadd.f32 %v690, %v706
        %v723 = vadd.f32 %v691, %v707
        %v724 = vadd.f32 %v692, %v708
        %v725 = vadd.f32 %v693, %v709
        %v726 = vadd.f32 %v694, %v710
        %v727 = vadd.f32 %v695, %v711
        %v728 = vadd.f32 %v696, %v712
        %v729 = vadd.f32 %v697, %v713
        %v730 = vadd.f32 %v698, %v714
        %v731 = vadd.f32 %v699, %v715
        %v732 = vadd.f32 %v700, %v716
        %v733 = vadd.f32 %v701, %v717
        %v734 = vmul.f32 %v670, %v670
        %v735 = vmul.f32 %v671, %v671
        %v736 = vmul.f32 %v672, %v672
        %v737 = vmul.f32 %v673, %v673
        %v738 = vmul.f32 %v674, %v674
        %v739 = vmul.f32 %v675, %v675
        %v740 = vmul.f32 %v676, %v676
        %v741 = vmul.f32 %v677, %v677
        %v742 = vmul.f32 %v678, %v678
        %v743 = vmul.f32 %v679, %v679
        %v744 = vmul.f32 %v680, %v680
        %v745 = vmul.f32 %v681, %v681
        %v746 = vmul.f32 %v682, %v682
        %v747 = vmul.f32 %v683, %v683
        %v748 = vmul.f32 %v684, %v684
        %v749 = vmul.f32 %v685, %v685
        %v750 = vadd.f32 %v718, %v734
        %v751 = vadd.f32 %v719, %v735
        %v752 = vadd.f32 %v720, %v736
        %v753 = vadd.f32 %v721, %v737
        %v754 = vadd.f32 %v722, %v738
        %v755 = vadd.f32 %v723, %v739
        %v756 = vadd.f32 %v724, %v740
        %v757 = vadd.f32 %v725, %v741
        %v758 = vadd.f32 %v726, %v742
        %v759 = vadd.f32 %v727, %v743
        %v760 = vadd.f32 %v728, %v744
        %v761 = vadd.f32 %v729, %v745
        %v762 = vadd.f32 %v730, %v746
        %v763 = vadd.f32 %v731, %v747
        %v764 = vadd.f32 %v732, %v748
        %v765 = vadd.f32 %v733, %v749
        %v766 = vsub.f32 0.0, %v750
        %v767 = vsub.f32 0.0, %v751
        %v768 = vsub.f32 0.0, %v752
        %v769 = vsub.f32 0.0, %v753
        %v770 = vsub.f32 0.0, %v754
        %v771 = vsub.f32 0.0, %v755
        %v772 = vsub.f32 0.0, %v756
        %v773 = vsub.f32 0.0, %v757
        %v774 = vsub.f32 0.0, %v758
        %v775 = vsub.f32 0.0, %v759
        %v776 = vsub.f32 0.0, %v760
        %v777 = vsub.f32 0.0, %v761
        %v778 = vsub.f32 0.0, %v762
        %v779 = vsub.f32 0.0, %v763
        %v780 = vsub.f32 0.0, %v764
        %v781 = vsub.f32 0.0, %v765
        %782 = vst [vmem:[%s164] sm:$0xff] %v766
        %783 = vst [vmem:[%s164 + $0x8] sm:$0xff] %v767
        %784 = vst [vmem:[%s164 + $0x10] sm:$0xff] %v768
        %785 = vst [vmem:[%s164 + $0x18] sm:$0xff] %v769
        %786 = vst [vmem:[%s164 + $0x20] sm:$0xff] %v770
        %787 = vst [vmem:[%s164 + $0x28] sm:$0xff] %v771
        %788 = vst [vmem:[%s164 + $0x30] sm:$0xff] %v772
        %789 = vst [vmem:[%s164 + $0x38] sm:$0xff] %v773
        %790 = vst [vmem:[%s164 + $0x40] sm:$0xff] %v774
        %791 = vst [vmem:[%s164 + $0x48] sm:$0xff] %v775
        %792 = vst [vmem:[%s164 + $0x50] sm:$0xff] %v776
        %793 = vst [vmem:[%s164 + $0x58] sm:$0xff] %v777
        %794 = vst [vmem:[%s164 + $0x60] sm:$0xff] %v778
        %795 = vst [vmem:[%s164 + $0x68] sm:$0xff] %v779
        %796 = vst [vmem:[%s164 + $0x70] sm:$0xff] %v780
        %797 = vst [vmem:[%s164 + $0x78] sm:$0xff] %v781
        %s798 = sand.u32 %s90, 1
        %s799 = scalar_lea.sflag [#allocation3], %s798
        %s800 = sand.u32 %s90, 1
        %s801 = smul.addr %s800, 128
        %s802 = scalar_lea.vmem [#allocation2], %s801
        // Predicated region
        $region29: #{tpu_custom_call.1} parent=27 // pred_check
          %p803 = pneg %p100
        $region30: #{tpu_custom_call.1} parent=27 // pred_check_branch
          %805 = sbr.rel (%p803) target = $region32
        $region31: #{tpu_custom_call.1} parent=27 // pred_region
          %s806 = smul.u32 16, %s21
          %s808 = ssub.s32 2048, 2048
          %809 = vsyncadd %s799, %s808
          %s810 = smul.addr %s20, 16
          %s811 = sadd.s32 %s806, %s810
          %s812 = smul.addr %s811, 128
          %s813 = scalar_lea.hbm %s2, %s812
          %s815 = sshll.u32 %s802, 4
          %s816 = int_to_ptr.vmem [resolvable:$true] %s815
          %818 = dma.vmem_to_hbm [thread:$0]  %s816, 2048, %s813, %s799
        $region32: #{tpu_custom_call.1} parent=27 // pred_fallthru
          _
      $region28: #{tpu_custom_call.1} parent=5 // pred_fallthru
        _
      %p819 = scmp.le.s32.totalorder 2, %s11
      // Predicated region
      $region33: #{tpu_custom_call.1} parent=5 // pred_check
        %p820 = pneg %p819
      $region34: #{tpu_custom_call.1} parent=5 // pred_check_branch
        %822 = sbr.rel (%p820) target = $region36
      $region35: #{tpu_custom_call.1} parent=5 // pred_region
        %s823 = ssub.s32 %s11, 2
        // Predicated region
        $region37: #{tpu_custom_call.1} parent=35 // pred_check
          %p824 = pneg %p106
        $region38: #{tpu_custom_call.1} parent=35 // pred_check_branch
          %826 = sbr.rel (%p824) target = $region40
        $region39: #{tpu_custom_call.1} parent=35 // pred_region
          %s827 = sand.u32 %s91, 1
          %s828 = scalar_lea.sflag [#allocation3], %s827
          %s829 = sand.u32 %s91, 1
          %s830 = smul.addr %s829, 128
          %s831 = scalar_lea.vmem [#allocation2], %s830
          %832 = dma.done %s828, 2048
        $region40: #{tpu_custom_call.1} parent=35 // pred_fallthru
          _
      $region36: #{tpu_custom_call.1} parent=5 // pred_fallthru
        _
    $region6: #{tpu_custom_call.1} parent=1 // loop_footer
      %s15 = sadd.s32 1, %s11
    $region7: #{tpu_custom_call.1} parent=1 // loop_footer_branch
      %10 = sbr.rel target = $region3
    $region8: #{tpu_custom_call.1} parent=1 // loop_exit
      _
    %833 = vsyncpa [#allocation3], 1
    %s834 = scalar_lea.sflag [#allocation3], 1
    %835 = vsyncpa %s834, 1

</llo_original>
